<compile_context>
chip_gen: v5e
topology: v5e:2x2
jax: 0.10.0
libtpu: 0.0.40
codegen_flags: <defaults>
</compile_context>

<pallas_src>
import functools
import numpy as np
import jax
import jax.numpy as jnp
from jax.experimental import pallas as pl
from jax.experimental.pallas import tpu as pltpu


# ---------------------------------------------------------------------------
# qkv linear: x @ W + b, split into q / k / v outputs inside the kernel
# ---------------------------------------------------------------------------
def _qkv_kernel(x_ref, w_ref, b_ref, q_ref, k_ref, v_ref):
    # x: (tm, C) bf16, w: (C, 3C) bf16 (q-columns pre-scaled), b: (1, 3C) f32
    y = jnp.dot(x_ref[...], w_ref[...], preferred_element_type=jnp.float32)
    y = y + b_ref[...]
    C = q_ref.shape[1]
    q_ref[...] = y[:, :C].astype(q_ref.dtype)
    k_ref[...] = y[:, C:2 * C].astype(k_ref.dtype)
    v_ref[...] = y[:, 2 * C:].astype(v_ref.dtype)


def pallas_qkv_split(x, w, b, *, tm):
    Np, C = x.shape
    out = jax.ShapeDtypeStruct((Np, C), jnp.bfloat16)
    return pl.pallas_call(
        _qkv_kernel,
        out_shape=(out, out, out),
        grid_spec=pltpu.PrefetchScalarGridSpec(
            num_scalar_prefetch=0,
            grid=(Np // tm,),
            in_specs=[
                pl.BlockSpec((tm, C), lambda i: (i, 0)),
                pl.BlockSpec((C, 3 * C), lambda i: (0, 0)),
                pl.BlockSpec((1, 3 * C), lambda i: (0, 0)),
            ],
            out_specs=(
                pl.BlockSpec((tm, C), lambda i: (i, 0)),
                pl.BlockSpec((tm, C), lambda i: (i, 0)),
                pl.BlockSpec((tm, C), lambda i: (i, 0)),
            ),
        ),
        compiler_params=pltpu.CompilerParams(dimension_semantics=("parallel",)),
    )(x, w, b)


# ---------------------------------------------------------------------------
# output projection linear
# ---------------------------------------------------------------------------
def _proj_kernel(x_ref, w_ref, b_ref, o_ref):
    y = jnp.dot(x_ref[...].astype(jnp.bfloat16), w_ref[...],
                preferred_element_type=jnp.float32) + b_ref[...]
    o_ref[...] = y.astype(o_ref.dtype)


def pallas_proj(x, w, b, *, tm):
    Np, C = x.shape
    return pl.pallas_call(
        _proj_kernel,
        out_shape=jax.ShapeDtypeStruct((Np, C), jnp.float32),
        grid_spec=pltpu.PrefetchScalarGridSpec(
            num_scalar_prefetch=0,
            grid=(Np // tm,),
            in_specs=[
                pl.BlockSpec((tm, C), lambda i: (i, 0)),
                pl.BlockSpec((C, C), lambda i: (0, 0)),
                pl.BlockSpec((1, C), lambda i: (0, 0)),
            ],
            out_specs=pl.BlockSpec((tm, C), lambda i: (i, 0)),
        ),
        compiler_params=pltpu.CompilerParams(dimension_semantics=("parallel",)),
    )(x, w, b)


# ---------------------------------------------------------------------------
# single-branch block-sparse windowed flash attention (points sorted by key)
# ---------------------------------------------------------------------------
def _attn_kernel(start_ref, cnt_ref, kq_ref, kk_ref, q_ref, k_ref, v_ref, o_ref,
                 acc_ref, m_ref, l_ref, *, num_heads, head_dim):
    Hb, D = num_heads, head_dim
    qi = pl.program_id(0)
    ki = pl.program_id(1)

    @pl.when(ki == 0)
    def _():
        acc_ref[...] = jnp.zeros(acc_ref.shape, jnp.float32)
        m_ref[...] = jnp.full(m_ref.shape, -1e30, jnp.float32)
        l_ref[...] = jnp.zeros(l_ref.shape, jnp.float32)

    # Skip kv steps outside this q-tile's (scalar-prefetched) block range.
    @pl.when(ki < cnt_ref[qi])
    def _():
        q = q_ref[...]                              # (tq, Cb) bf16 (pre-scaled)
        k = k_ref[...]                              # (tk, Cb) bf16
        v = v_ref[...]                              # (tk, Cb) bf16
        mask = kq_ref[...] == kk_ref[...]           # (tq, 1)==(1, tk) -> (tq, tk)
        for h in range(Hb):                         # small static head loop
            sl = slice(h * D, (h + 1) * D)
            s = jax.lax.dot_general(q[:, sl], k[:, sl], (((1,), (1,)), ((), ())),
                                    preferred_element_type=jnp.float32)  # (tq, tk)
            s = jnp.where(mask, s, -1e30)
            m_prev = m_ref[:, h:h + 1]
            m_new = jnp.maximum(m_prev, jnp.max(s, axis=-1, keepdims=True))
            alpha = jnp.exp(m_prev - m_new)
            p = jnp.where(mask, jnp.exp(s - m_new), 0.0)   # masked entries exactly 0
            l_ref[:, h:h + 1] = alpha * l_ref[:, h:h + 1] + jnp.sum(
                p, axis=-1, keepdims=True)
            acc_ref[:, sl] = alpha * acc_ref[:, sl] + jax.lax.dot_general(
                p.astype(v.dtype), v[:, sl], (((1,), (0,)), ((), ())),
                preferred_element_type=jnp.float32)
            m_ref[:, h:h + 1] = m_new

    @pl.when(ki == pl.num_programs(1) - 1)
    def _():
        # acc scratch is lane-dense (tq, Cb) -> write o_ref directly (no concat).
        for h in range(Hb):
            sl = slice(h * D, (h + 1) * D)
            inv = 1.0 / l_ref[:, h:h + 1]           # exact divide, once per q tile
            o_ref[:, sl] = (acc_ref[:, sl] * inv).astype(o_ref.dtype)


def pallas_branch_attention(start_blk, cnt_blk, keys_col, keys_row, q, k, v, *,
                            num_heads, head_dim, tile, max_kv_tiles=None):
    Np, Cb = q.shape
    nq = Np // tile
    nkv = nq if max_kv_tiles is None else min(int(max_kv_tiles), nq)

    def q_map(qi, ki, s, c):
        return (qi, 0)

    def kv_blk(qi, ki, s, c):
        # Clamp to the valid range end so skipped steps re-use the same block
        # (no redundant DMA after the last valid kv tile).
        return s[qi] + jnp.minimum(ki, c[qi] - 1)

    kernel = functools.partial(_attn_kernel, num_heads=num_heads, head_dim=head_dim)
    return pl.pallas_call(
        kernel,
        out_shape=jax.ShapeDtypeStruct((Np, Cb), jnp.bfloat16),
        grid_spec=pltpu.PrefetchScalarGridSpec(
            num_scalar_prefetch=2,
            grid=(nq, nkv),
            in_specs=[
                pl.BlockSpec((tile, 1), q_map),                                   # q keys
                pl.BlockSpec((1, tile), lambda qi, ki, s, c: (0, kv_blk(qi, ki, s, c))),  # k keys
                pl.BlockSpec((tile, Cb), q_map),                                  # q
                pl.BlockSpec((tile, Cb), lambda qi, ki, s, c: (kv_blk(qi, ki, s, c), 0)),  # k
                pl.BlockSpec((tile, Cb), lambda qi, ki, s, c: (kv_blk(qi, ki, s, c), 0)),  # v
            ],
            out_specs=pl.BlockSpec((tile, Cb), q_map),
            scratch_shapes=[
                pltpu.VMEM((tile, Cb), jnp.float32),          # acc (lane-dense)
                pltpu.VMEM((tile, num_heads), jnp.float32),   # running max
                pltpu.VMEM((tile, num_heads), jnp.float32),   # running sum
            ],
        ),
        compiler_params=pltpu.CompilerParams(
            dimension_semantics=("parallel", "arbitrary")),
    )(start_blk, cnt_blk, keys_col, keys_row, q, k, v)


# ---------------------------------------------------------------------------
# Glue (plain JAX): coordinate transforms, packed window keys, sorting,
# per-q-tile kv ranges, parameter setup
# ---------------------------------------------------------------------------
def cart2sphere(xyz):
    x, y, z = xyz[:, 0], xyz[:, 1], xyz[:, 2]
    theta = (jnp.arctan2(y, x) + np.pi) * 180.0 / np.pi
    beta = jnp.arctan2(jnp.sqrt(x * x + y * y), z) * 180.0 / np.pi
    r = jnp.sqrt(x * x + y * y + z * z)
    return jnp.stack([theta, beta, r], -1)


def window_key(xyz, batch, window_size):
    # shift_win=False -> cell = floor(coord / window_size); pack [batch,cx,cy,cz]
    # into one non-negative int32 key (equal key <=> same batch & window cell).
    ws = jnp.asarray(window_size, jnp.float32)
    cells = jnp.floor(xyz / ws).astype(jnp.int32)
    cells = cells - jnp.min(cells, axis=0, keepdims=True)     # shift >= 0
    sizes = jnp.max(cells, axis=0) + 1
    key = batch.astype(jnp.int32)
    for a in range(3):
        key = key * sizes[a] + cells[:, a]
    return key


def _round_up(x, m):
    return ((x + m - 1) // m) * m


def init_params(key, embed_dim):
    k1, k2, k3, k4 = jax.random.split(key, 4)
    C = embed_dim
    return {
        "qkv_w": 0.02 * jax.random.normal(k1, (C, 3 * C), jnp.float32),
        "qkv_b": 0.02 * jax.random.normal(k2, (1, 3 * C), jnp.float32),
        "proj_w": 0.02 * jax.random.normal(k3, (C, C), jnp.float32),
        "proj_b": 0.02 * jax.random.normal(k4, (1, C), jnp.float32),
    }


def sparse_multihead_sa_sphere_concat(params, query_feats, query_indices,
                                      num_heads, window_size, window_size_sphere,
                                      max_kv_tiles=None):
    N, C = query_feats.shape
    H = num_heads
    D = C // H
    H1 = H // 2                      # num_heads_brc1
    scale = D ** (-0.5)

    xyz = query_indices[:, 1:].astype(jnp.float32)
    batch = query_indices[:, 0].astype(jnp.int32)

    # Fold the q scale into the qkv weight/bias (free); bf16 MXU operands.
    col_scale = jnp.concatenate(
        [jnp.full((C,), scale, jnp.float32),
         jnp.ones((2 * C,), jnp.float32)])[None, :]
    qkv_w = (params["qkv_w"] * col_scale).astype(jnp.bfloat16)
    qkv_b = params["qkv_b"] * col_scale
    proj_w = params["proj_w"].astype(jnp.bfloat16)
    proj_b = params["proj_b"]

    # Packed per-point window keys for both branches.
    key_cart = window_key(xyz, batch, window_size)
    key_sph = window_key(cart2sphere(xyz), batch, window_size_sphere)

    # Tiling / padding. For large N: attention tile 256, linear tile 1024, and
    # Np a multiple of 1024 so the q-tile count is even (megacore balance).
    if N >= 256:
        T = 256
        lin_tile = 1024
        Np = _round_up(N, lin_tile)
    else:
        T = _round_up(max(N, 8), 8)
        lin_tile = T
        Np = T
    pad = Np - N

    x = jnp.pad(query_feats.astype(jnp.bfloat16), ((0, pad), (0, 0)))

    # qkv projection; the kernel also splits q/k/v (no XLA reshape/transpose).
    q, k, v = pallas_qkv_split(x, qkv_w, qkv_b, tm=lin_tile)

    SENT = jnp.iinfo(jnp.int32).max          # padded rows sort last, own window
    outs = []
    for keyv, c0, c1 in ((key_cart, 0, H1 * D), (key_sph, H1 * D, C)):
        keys_p = jnp.pad(keyv, (0, pad), constant_values=SENT)
        perm = jnp.argsort(keys_p)
        inv_perm = jnp.argsort(perm)
        ks = keys_p[perm]                     # (Np,) sorted keys

        # Per-q-tile kv block range: with sorted keys, matching rows are a
        # contiguous run -> block-sparse iteration driven by scalar prefetch.
        lo = jnp.searchsorted(ks, ks[::T], side="left")
        hi = jnp.searchsorted(ks, ks[T - 1::T], side="right")
        start_blk = (lo // T).astype(jnp.int32)
        cnt_blk = ((hi - 1) // T - lo // T + 1).astype(jnp.int32)
        if max_kv_tiles is not None:
            cnt_blk = jnp.minimum(cnt_blk, max_kv_tiles)

        qb = jnp.take(q[:, c0:c1], perm, axis=0)
        kb = jnp.take(k[:, c0:c1], perm, axis=0)
        vb = jnp.take(v[:, c0:c1], perm, axis=0)

        ob = pallas_branch_attention(
            start_blk, cnt_blk, ks[:, None], ks[None, :], qb, kb, vb,
            num_heads=(c1 - c0) // D, head_dim=D, tile=T,
            max_kv_tiles=max_kv_tiles)
        outs.append(jnp.take(ob, inv_perm, axis=0))   # unsort to original order

    attn = jnp.concatenate(outs, axis=1)     # (Np, C) bf16, heads in concat order
    out = pallas_proj(attn, proj_w, proj_b, tm=lin_tile)
    return out[:N]


# ---------------------------------------------------------------------------
# Main
# ---------------------------------------------------------------------------
if __name__ == "__main__":
    N = 64            # number of sparse points
    embed_dim = 32    # C
    num_heads = 4     # -> head_dim = 8, num_heads_brc1 = 2
    batch_size = 2
    window_size = (0.8, 0.8, 0.8)
    window_size_sphere = (60.0, 60.0, 2.0)

    key = jax.random.PRNGKey(0)
    kp, kx = jax.random.split(key)
    params = init_params(kp, embed_dim)

    kf, kc = jax.random.split(kx)
    query_feats = jax.random.normal(kf, (N, embed_dim), jnp.float32)
    xyz = jax.random.uniform(kc, (N, 3), jnp.float32, minval=-2.0, maxval=2.0)
    batch = jnp.repeat(jnp.arange(batch_size, dtype=jnp.float32), N // batch_size)
    query_indices = jnp.concatenate([batch[:, None], xyz], axis=1)  # (N, 4)

    out = sparse_multihead_sa_sphere_concat(
        params, query_feats, query_indices, num_heads, window_size,
        window_size_sphere)
    out = jax.block_until_ready(out)
    assert out.shape == (N, embed_dim)
    assert bool(jnp.all(jnp.isfinite(out)))
    print("KERNEL_OK")
</pallas_src>

<mosaic_0001>
module attributes {stable_mosaic.version = 11 : i64} {
  func.func @_qkv_kernel(%arg0: i32, %arg1: memref<64x32xbf16, #tpu.memory_space<vmem>>, %arg2: memref<32x96xbf16, #tpu.memory_space<vmem>>, %arg3: memref<1x96xf32, #tpu.memory_space<vmem>>, %arg4: memref<64x32xbf16, #tpu.memory_space<vmem>>, %arg5: memref<64x32xbf16, #tpu.memory_space<vmem>>, %arg6: memref<64x32xbf16, #tpu.memory_space<vmem>>) attributes {dimension_semantics = [#tpu.dimension_semantics<parallel>], iteration_bounds = array<i64: 1>, scalar_prefetch = 0 : i64, scratch_operands = 0 : i64, tpu.core_type = #tpu.core_type<tc>, window_params = [{transform_indices = @transform_0, window_bounds = array<i64: 64, 32>}, {pipeline_mode = #tpu.pipeline_mode<synchronous>, transform_indices = @transform_1, window_bounds = array<i64: 32, 96>}, {pipeline_mode = #tpu.pipeline_mode<synchronous>, transform_indices = @transform_2, window_bounds = array<i64: 1, 96>}, {transform_indices = @transform_3, window_bounds = array<i64: 64, 32>}, {transform_indices = @transform_4, window_bounds = array<i64: 64, 32>}, {transform_indices = @transform_5, window_bounds = array<i64: 64, 32>}]} {
    %c0 = arith.constant 0 : index
    %c0_0 = arith.constant 0 : index
    %0 = vector.load %arg1[%c0, %c0_0] : memref<64x32xbf16, #tpu.memory_space<vmem>>, vector<64x32xbf16>
    %c0_1 = arith.constant 0 : index
    %c0_2 = arith.constant 0 : index
    %1 = vector.load %arg2[%c0_1, %c0_2] : memref<32x96xbf16, #tpu.memory_space<vmem>>, vector<32x96xbf16>
    %cst = arith.constant dense<0.000000e+00> : vector<64x96xf32>
    %2 = tpu.matmul %0, %1, %cst {dimension_numbers = #tpu.dot_dimension_numbers<[1], [0], [0], [1], [0, 0, 1, 1], [], []>} : vector<64x32xbf16>, vector<32x96xbf16>, vector<64x96xf32> -> vector<64x96xf32>
    %c0_3 = arith.constant 0 : index
    %c0_4 = arith.constant 0 : index
    %3 = vector.load %arg3[%c0_3, %c0_4] : memref<1x96xf32, #tpu.memory_space<vmem>>, vector<1x96xf32>
    %4 = vector.broadcast %3 : vector<1x96xf32> to vector<64x96xf32>
    %5 = arith.addf %2, %4 : vector<64x96xf32>
    %6 = vector.extract_strided_slice %5 {offsets = [0, 0], sizes = [64, 32], strides = [1, 1]} : vector<64x96xf32> to vector<64x32xf32>
    %7 = arith.truncf %6 : vector<64x32xf32> to vector<64x32xbf16>
    %c0_5 = arith.constant 0 : index
    %c0_6 = arith.constant 0 : index
    %8 = vector.load %arg4[%c0_5, %c0_6] : memref<64x32xbf16, #tpu.memory_space<vmem>>, vector<64x32xbf16>
    tpu.vector_store %arg4[%c0_5, %c0_6], %7 {strides = array<i32>} : memref<64x32xbf16, #tpu.memory_space<vmem>>, vector<64x32xbf16>,
    %9 = vector.extract_strided_slice %5 {offsets = [0, 32], sizes = [64, 32], strides = [1, 1]} : vector<64x96xf32> to vector<64x32xf32>
    %10 = arith.truncf %9 : vector<64x32xf32> to vector<64x32xbf16>
    %c0_7 = arith.constant 0 : index
    %c0_8 = arith.constant 0 : index
    %11 = vector.load %arg5[%c0_7, %c0_8] : memref<64x32xbf16, #tpu.memory_space<vmem>>, vector<64x32xbf16>
    tpu.vector_store %arg5[%c0_7, %c0_8], %10 {strides = array<i32>} : memref<64x32xbf16, #tpu.memory_space<vmem>>, vector<64x32xbf16>,
    %12 = vector.extract_strided_slice %5 {offsets = [0, 64], sizes = [64, 32], strides = [1, 1]} : vector<64x96xf32> to vector<64x32xf32>
    %13 = arith.truncf %12 : vector<64x32xf32> to vector<64x32xbf16>
    %c0_9 = arith.constant 0 : index
    %c0_10 = arith.constant 0 : index
    %14 = vector.load %arg6[%c0_9, %c0_10] : memref<64x32xbf16, #tpu.memory_space<vmem>>, vector<64x32xbf16>
    tpu.vector_store %arg6[%c0_9, %c0_10], %13 {strides = array<i32>} : memref<64x32xbf16, #tpu.memory_space<vmem>>, vector<64x32xbf16>,
    return
  }
  func.func @transform_0(%arg0: i32) -> (i32, i32) {
    %c0_i32 = arith.constant 0 : i32
    %c0_i32_0 = arith.constant 0 : i32
    return %arg0, %c0_i32 : i32, i32
  }
  func.func @transform_1(%arg0: i32) -> (i32, i32) {
    %c0_i32 = arith.constant 0 : i32
    %c0_i32_0 = arith.constant 0 : i32
    %c0_i32_1 = arith.constant 0 : i32
    return %c0_i32, %c0_i32_0 : i32, i32
  }
  func.func @transform_2(%arg0: i32) -> (i32, i32) {
    %c0_i32 = arith.constant 0 : i32
    %c0_i32_0 = arith.constant 0 : i32
    %c0_i32_1 = arith.constant 0 : i32
    return %c0_i32, %c0_i32_0 : i32, i32
  }
  func.func @transform_3(%arg0: i32) -> (i32, i32) {
    %c0_i32 = arith.constant 0 : i32
    %c0_i32_0 = arith.constant 0 : i32
    return %arg0, %c0_i32 : i32, i32
  }
  func.func @transform_4(%arg0: i32) -> (i32, i32) {
    %c0_i32 = arith.constant 0 : i32
    %c0_i32_0 = arith.constant 0 : i32
    return %arg0, %c0_i32 : i32, i32
  }
  func.func @transform_5(%arg0: i32) -> (i32, i32) {
    %c0_i32 = arith.constant 0 : i32
    %c0_i32_0 = arith.constant 0 : i32
    return %arg0, %c0_i32 : i32, i32
  }
}

</mosaic_0001>

<llo_original>
// kernel: tpu_custom_call.1
$region0: #{tpu_custom_call.1}
  #allocation0 [shape = 'u32[]', space=smem, size = 0x4, offset = 0x4, fixed_abs, tag = 'smem constant byte address 0x4 - core index']
  #allocation1 [shape = 'u32[72,128]{1,0:T(1,128)}', space=vmem, size = 0x9000, scoped, tag = 'internal scratch']
  %s0 = inlined_call_operand.vmem [shape: bf16[64,32], index: 0, kind: input, shape index: {}]
  %s1 = inlined_call_operand.vmem [shape: bf16[32,96], index: 1, kind: input, shape index: {}]
  %s2 = inlined_call_operand.vmem [shape: f32[1,96], index: 2, kind: input, shape index: {}]
  %s3 = inlined_call_operand.vmem [shape: bf16[64,32], index: 3, kind: output, shape index: {0}]
  %s4 = inlined_call_operand.vmem [shape: bf16[64,32], index: 4, kind: output, shape index: {1}]
  %s5 = inlined_call_operand.vmem [shape: bf16[64,32], index: 5, kind: output, shape index: {2}]
  %6 = xla_tuple %s3, %s4, %s5
  %s7 = sld [smem:[#allocation0]]
  $region38: #{tpu_custom_call.1} parent=0
    _
  %s9 = ssub.s32 1, %s7
  %s10 = scalar_select 0, %s9, %s7
  // Predicated region
  $region2: #{tpu_custom_call.1} parent=0 // pred_check
    _
  $region3: #{tpu_custom_call.1} parent=0 // pred_check_branch
    %12 = sbr.rel (0) target = $region5
  $region4: #{tpu_custom_call.1} parent=0 // pred_region
    _
  $region5: #{tpu_custom_call.1} parent=0 // pred_fallthru
    _
  // Predicated region
  $region6: #{tpu_custom_call.1} parent=0 // pred_check
    _
  $region7: #{tpu_custom_call.1} parent=0 // pred_check_branch
    %14 = sbr.rel (0) target = $region9
  $region8: #{tpu_custom_call.1} parent=0 // pred_region
    _
  $region9: #{tpu_custom_call.1} parent=0 // pred_fallthru
    _
  // Predicated region
  $region10: #{tpu_custom_call.1} parent=0 // pred_check
    _
  $region11: #{tpu_custom_call.1} parent=0 // pred_check_branch
    %16 = sbr.rel (0) target = $region13
  $region12: #{tpu_custom_call.1} parent=0 // pred_region
    _
  $region13: #{tpu_custom_call.1} parent=0 // pred_fallthru
    _
  %v18 = vld [vmem:[%s0] sm:$0xf]
  %v19 = vld [vmem:[%s0 + $0x4] sm:$0xf]
  %v20 = vld [vmem:[%s0 + $0x8] sm:$0xf]
  %v21 = vld [vmem:[%s0 + $0xc] sm:$0xf]
  %v22 = vld [vmem:[%s0 + $0x10] sm:$0xf]
  %v23 = vld [vmem:[%s0 + $0x14] sm:$0xf]
  %v24 = vld [vmem:[%s0 + $0x18] sm:$0xf]
  %v25 = vld [vmem:[%s0 + $0x1c] sm:$0xf]
  %v26 = vld [vmem:[%s1] sm:$0xf]
  %v27 = vld [vmem:[%s1 + $0x4] sm:$0xf]
  %v28 = vld [vmem:[%s1 + $0x8] sm:$0xf]
  %v29 = vld [vmem:[%s1 + $0xc] sm:$0xf]
  %v30 = vld [vmem:[%s2] sm:$0x1]
  %v32 = vperm.slane %v30, 0
  %v42 = vunpack.c.l.b16 %v18
  %v43 = vunpack.c.l.b16 %v19
  %v44 = vunpack.c.l.b16 %v20
  %v45 = vunpack.c.l.b16 %v21
  %v46 = vunpack.c.l.b16 %v22
  %v47 = vunpack.c.l.b16 %v23
  %v48 = vunpack.c.l.b16 %v24
  %v49 = vunpack.c.l.b16 %v25
  %v50 = vpack.c.b16 %v43, %v42
  %v51 = vpack.c.b16 %v45, %v44
  %v52 = vpack.c.b16 %v47, %v46
  %v53 = vpack.c.b16 %v49, %v48
  %v58 = vunpack.c.l.b16 %v26
  %v59 = vunpack.c.l.b16 %v27
  %v60 = vunpack.c.l.b16 %v28
  %v61 = vunpack.c.l.b16 %v29
  %v62 = vpack.c.b16 %v59, %v58
  %v63 = vpack.c.b16 %v61, %v60
  %vm66 = vcmask 261120
  %v68 = vsel %vm66, %v50, 0
  %v71 = vsel %vm66, %v51, 0
  %v74 = vsel %vm66, %v52, 0
  %v77 = vsel %vm66, %v53, 0
  %79 = vmatpush.bf16.msra.mxu0 0
  %80 = vmatpush.bf16.msra.mxu0 0
  %81 = vmatpush.bf16.msra.mxu0 0
  %82 = vmatpush.bf16.msra.mxu0 0
  %83 = vmatpush.bf16.msra.mxu0 0
  %84 = vmatpush.bf16.msra.mxu0 0
  %85 = vmatpush.bf16.msra.mxu0 %v63
  %86 = vmatpush.bf16.msra.mxu0 %v62
  %87 = vmatmul.bf16.gmra.mxu0 %v68
  %v88 = vpop.f32.mrf.mxu0
  %v89 = vadd.f32 %v32, %v88
  %v90 = vpop.f32.mrf.mxu0
  %v91 = vadd.f32 %v32, %v90
  %92 = vmatmul.bf16.gmra.mxu0 %v71
  %v93 = vpop.f32.mrf.mxu0
  %v94 = vadd.f32 %v32, %v93
  %v95 = vpop.f32.mrf.mxu0
  %v96 = vadd.f32 %v32, %v95
  %97 = vmatmul.bf16.gmra.mxu0 %v74
  %v98 = vpop.f32.mrf.mxu0
  %v99 = vadd.f32 %v32, %v98
  %v100 = vpop.f32.mrf.mxu0
  %v101 = vadd.f32 %v32, %v100
  %102 = vmatmul.bf16.gmra.mxu0 %v77
  %v103 = vpop.f32.mrf.mxu0
  %v104 = vadd.f32 %v32, %v103
  %v105 = vpop.f32.mrf.mxu0
  %v106 = vadd.f32 %v32, %v105
  %107 = vdwg.mxu0
  %v108 = vpack.c.bf16 %v89, %v89
  %v109 = vpack.c.bf16 %v91, %v91
  %v110 = vpack.c.bf16 %v94, %v94
  %v111 = vpack.c.bf16 %v96, %v96
  %v112 = vpack.c.bf16 %v99, %v99
  %v113 = vpack.c.bf16 %v101, %v101
  %v114 = vpack.c.bf16 %v104, %v104
  %v115 = vpack.c.bf16 %v106, %v106
  %vm116 = vcmask 257024
  %117 = vst.msk [vmem:[%s3] sm:$0xf] %vm116, %v108
  %118 = vst.msk [vmem:[%s3 + $0x4] sm:$0xf] %vm116, %v109
  %119 = vst.msk [vmem:[%s3 + $0x8] sm:$0xf] %vm116, %v110
  %120 = vst.msk [vmem:[%s3 + $0xc] sm:$0xf] %vm116, %v111
  %121 = vst.msk [vmem:[%s3 + $0x10] sm:$0xf] %vm116, %v112
  %122 = vst.msk [vmem:[%s3 + $0x14] sm:$0xf] %vm116, %v113
  %123 = vst.msk [vmem:[%s3 + $0x18] sm:$0xf] %vm116, %v114
  %124 = vst.msk [vmem:[%s3 + $0x1c] sm:$0xf] %vm116, %v115
  %133 = vrot.lane.b32.xlu0 %v108, 96
  %v134 = vpop.permute.xlu0 %133
  %135 = vrot.lane.b32.xlu0 %v109, 96
  %v136 = vpop.permute.xlu0 %135
  %137 = vrot.lane.b32.xlu0 %v110, 96
  %v138 = vpop.permute.xlu0 %137
  %139 = vrot.lane.b32.xlu0 %v111, 96
  %v140 = vpop.permute.xlu0 %139
  %141 = vrot.lane.b32.xlu0 %v112, 96
  %v142 = vpop.permute.xlu0 %141
  %143 = vrot.lane.b32.xlu0 %v113, 96
  %v144 = vpop.permute.xlu0 %143
  %145 = vrot.lane.b32.xlu0 %v114, 96
  %v146 = vpop.permute.xlu0 %145
  %147 = vrot.lane.b32.xlu0 %v115, 96
  %v148 = vpop.permute.xlu0 %147
  %157 = vst.msk [vmem:[%s4] sm:$0xf] %vm116, %v134
  %158 = vst.msk [vmem:[%s4 + $0x4] sm:$0xf] %vm116, %v136
  %159 = vst.msk [vmem:[%s4 + $0x8] sm:$0xf] %vm116, %v138
  %160 = vst.msk [vmem:[%s4 + $0xc] sm:$0xf] %vm116, %v140
  %161 = vst.msk [vmem:[%s4 + $0x10] sm:$0xf] %vm116, %v142
  %162 = vst.msk [vmem:[%s4 + $0x14] sm:$0xf] %vm116, %v144
  %163 = vst.msk [vmem:[%s4 + $0x18] sm:$0xf] %vm116, %v146
  %164 = vst.msk [vmem:[%s4 + $0x1c] sm:$0xf] %vm116, %v148
  %165 = vrot.lane.b32.xlu0 %v108, 64
  %v166 = vpop.permute.xlu0 %165
  %167 = vrot.lane.b32.xlu0 %v109, 64
  %v168 = vpop.permute.xlu0 %167
  %169 = vrot.lane.b32.xlu0 %v110, 64
  %v170 = vpop.permute.xlu0 %169
  %171 = vrot.lane.b32.xlu0 %v111, 64
  %v172 = vpop.permute.xlu0 %171
  %173 = vrot.lane.b32.xlu0 %v112, 64
  %v174 = vpop.permute.xlu0 %173
  %175 = vrot.lane.b32.xlu0 %v113, 64
  %v176 = vpop.permute.xlu0 %175
  %177 = vrot.lane.b32.xlu0 %v114, 64
  %v178 = vpop.permute.xlu0 %177
  %179 = vrot.lane.b32.xlu0 %v115, 64
  %v180 = vpop.permute.xlu0 %179
  %189 = vst.msk [vmem:[%s5] sm:$0xf] %vm116, %v166
  %190 = vst.msk [vmem:[%s5 + $0x4] sm:$0xf] %vm116, %v168
  %191 = vst.msk [vmem:[%s5 + $0x8] sm:$0xf] %vm116, %v170
  %192 = vst.msk [vmem:[%s5 + $0xc] sm:$0xf] %vm116, %v172
  %193 = vst.msk [vmem:[%s5 + $0x10] sm:$0xf] %vm116, %v174
  %194 = vst.msk [vmem:[%s5 + $0x14] sm:$0xf] %vm116, %v176
  %195 = vst.msk [vmem:[%s5 + $0x18] sm:$0xf] %vm116, %v178
  %196 = vst.msk [vmem:[%s5 + $0x1c] sm:$0xf] %vm116, %v180
  // Predicated region
  $region14: #{tpu_custom_call.1} parent=0 // pred_check
    _
  $region15: #{tpu_custom_call.1} parent=0 // pred_check_branch
    %198 = sbr.rel (0) target = $region17
  $region16: #{tpu_custom_call.1} parent=0 // pred_region
    _
  $region17: #{tpu_custom_call.1} parent=0 // pred_fallthru
    _
  // Predicated region
  $region18: #{tpu_custom_call.1} parent=0 // pred_check
    _
  $region19: #{tpu_custom_call.1} parent=0 // pred_check_branch
    %200 = sbr.rel (0) target = $region21
  $region20: #{tpu_custom_call.1} parent=0 // pred_region
    _
  $region21: #{tpu_custom_call.1} parent=0 // pred_fallthru
    _
  // Predicated region
  $region22: #{tpu_custom_call.1} parent=0 // pred_check
    _
  $region23: #{tpu_custom_call.1} parent=0 // pred_check_branch
    %202 = sbr.rel (0) target = $region25
  $region24: #{tpu_custom_call.1} parent=0 // pred_region
    _
  $region25: #{tpu_custom_call.1} parent=0 // pred_fallthru
    _
  // Predicated region
  $region26: #{tpu_custom_call.1} parent=0 // pred_check
    _
  $region27: #{tpu_custom_call.1} parent=0 // pred_check_branch
    %204 = sbr.rel (0) target = $region29
  $region28: #{tpu_custom_call.1} parent=0 // pred_region
    _
  $region29: #{tpu_custom_call.1} parent=0 // pred_fallthru
    _
  // Predicated region
  $region30: #{tpu_custom_call.1} parent=0 // pred_check
    _
  $region31: #{tpu_custom_call.1} parent=0 // pred_check_branch
    %206 = sbr.rel (0) target = $region33
  $region32: #{tpu_custom_call.1} parent=0 // pred_region
    _
  $region33: #{tpu_custom_call.1} parent=0 // pred_fallthru
    _
  // Predicated region
  $region34: #{tpu_custom_call.1} parent=0 // pred_check
    _
  $region35: #{tpu_custom_call.1} parent=0 // pred_check_branch
    %208 = sbr.rel (0) target = $region37
  $region36: #{tpu_custom_call.1} parent=0 // pred_region
    _
  $region37: #{tpu_custom_call.1} parent=0 // pred_fallthru
    _

</llo_original>
